<compile_context>
chip_gen: v7x
topology: tpu7x:2x2x1
jax: 0.10.0
libtpu: 0.0.40
codegen_flags: <defaults>
</compile_context>

<pallas_src>
import functools

import jax
import jax.numpy as jnp
from jax.experimental import pallas as pl
from jax.experimental.pallas import tpu as pltpu


def _round_up(x, m):
    return (x + m - 1) // m * m


def _quantize_kernel(x_ref, embed_ref, e2_ref, q_ref, ind_ref, sse_ref,
                     *, n_valid_rows, tile_rows, needs_row_mask):
    # x_ref:     (TN, dim)         current tile of flattened inputs
    # embed_ref: (dim, n_embed_p)  zero-padded codebook (resident every step)
    # e2_ref:    (1, n_embed_p)    precomputed ||embed_j||^2 (+1e30 on padded cols)
    # q_ref:     (TN, dim)         quantized output tile
    # ind_ref:   (TN, 1)           int32 code indices
    # sse_ref:   (1, 1, dim)       per-tile partial sums of squared error
    x = x_ref[...].astype(jnp.float32)
    e = embed_ref[...].astype(jnp.float32)
    e2 = e2_ref[...]                                   # (1, n_embed_p)

    # argmin_j ||x - e_j||^2 == argmin_j (-2 x.e_j + ||e_j||^2); the per-row
    # ||x||^2 term is constant in j and dropped (saves an XLU reduction/tile).
    xe = jnp.dot(x, e, preferred_element_type=jnp.float32)   # (TN, n_embed_p)
    dist = e2 - 2.0 * xe

    n_embed_p = dist.shape[1]
    ids = jax.lax.broadcasted_iota(jnp.int32, dist.shape, 1)
    min_val = jnp.min(dist, axis=1, keepdims=True)
    # first index attaining the minimum distance (== argmax of -dist in torch)
    ind = jnp.min(jnp.where(dist == min_val, ids, n_embed_p),
                  axis=1, keepdims=True)

    # one-hot gather of code vectors: onehot (TN, n_embed_p) contracted with
    # embed (dim, n_embed_p) along the codebook axis -> (TN, dim)  (MXU matmul,
    # avoids an in-kernel gather / transpose).  Padded columns are all-zero.
    onehot = (ids == ind).astype(jnp.float32)
    q = jax.lax.dot_general(
        onehot, e,
        dimension_numbers=(((1,), (1,)), ((), ())),
        preferred_element_type=jnp.float32,
    )

    ind_ref[...] = ind.astype(jnp.int32)
    q_ref[...] = q.astype(q_ref.dtype)

    # Per-tile partial SSE, reduced over the row axis only -> (1, dim); the
    # wrapper sums the partials.  Every grid step is independent ("parallel").
    d = q - x
    if needs_row_mask:
        row = jax.lax.broadcasted_iota(jnp.int32, (d.shape[0], 1), 0)
        valid = (pl.program_id(0) * tile_rows + row) < n_valid_rows
        d = jnp.where(valid, d, 0.0)
    sse_ref[...] = jnp.sum(d * d, axis=0, keepdims=True)[None]


@functools.partial(jax.jit, static_argnames=("tile_n",))
def quantize_forward(x, embed, *, tile_n=1024):
    """Forward pass of Quantize.

    Args:
      x:     (..., dim) float32, channel-last input.
      embed: (dim, n_embed) float32 codebook.

    Returns:
      quantize:  same shape as x (straight-through forward value == nearest code)
      diff:      scalar mean squared error between quantize and x
      embed_ind: x.shape[:-1] int32 code indices
    """
    dim, n_embed = embed.shape
    orig_shape = x.shape
    flat = x.reshape(-1, dim).astype(jnp.float32)
    n_rows = flat.shape[0]

    # Pad codebook columns to a lane-dense multiple of 128; padded columns get a
    # huge ||e||^2 so they never win the argmin.  ||e||^2 hoisted out of kernel.
    n_embed_p = _round_up(n_embed, 128)
    embed_f32 = embed.astype(jnp.float32)
    embed_p = jnp.pad(embed_f32, ((0, 0), (0, n_embed_p - n_embed)))
    e2 = jnp.sum(embed_f32 * embed_f32, axis=0)
    e2_p = jnp.pad(e2, (0, n_embed_p - n_embed),
                   constant_values=1e30).reshape(1, n_embed_p)

    # Pick a row tile (multiple of 8) and zero-pad rows so the grid is exact.
    tile_rows = _round_up(min(tile_n, _round_up(n_rows, 8)), 8)
    n_rows_p = _round_up(n_rows, tile_rows)
    if n_rows_p != n_rows:
        flat = jnp.pad(flat, ((0, n_rows_p - n_rows), (0, 0)))
    num_tiles = n_rows_p // tile_rows

    kernel = functools.partial(
        _quantize_kernel,
        n_valid_rows=n_rows,
        tile_rows=tile_rows,
        needs_row_mask=(n_rows_p != n_rows),
    )

    q_flat, ind_flat, sse = pl.pallas_call(
        kernel,
        out_shape=(
            jax.ShapeDtypeStruct((n_rows_p, dim), x.dtype),
            jax.ShapeDtypeStruct((n_rows_p, 1), jnp.int32),
            jax.ShapeDtypeStruct((num_tiles, 1, dim), jnp.float32),
        ),
        grid_spec=pltpu.PrefetchScalarGridSpec(
            num_scalar_prefetch=0,
            grid=(num_tiles,),
            in_specs=[
                pl.BlockSpec((tile_rows, dim), lambda i: (i, 0)),
                pl.BlockSpec((dim, n_embed_p), lambda i: (0, 0)),
                pl.BlockSpec((1, n_embed_p), lambda i: (0, 0)),
            ],
            out_specs=[
                pl.BlockSpec((tile_rows, dim), lambda i: (i, 0)),
                pl.BlockSpec((tile_rows, 1), lambda i: (i, 0)),
                pl.BlockSpec((1, 1, dim), lambda i: (i, 0, 0)),
            ],
        ),
        compiler_params=pltpu.CompilerParams(
            # every tile is independent; lets the grid shard across both
            # TensorCores on v7x (neutral on v5e/v6e).
            dimension_semantics=("parallel",),
        ),
    )(flat, embed_p, e2_p)

    quantize = q_flat[:n_rows].reshape(orig_shape).astype(x.dtype)
    embed_ind = ind_flat[:n_rows, 0].reshape(orig_shape[:-1])
    diff = jnp.sum(sse) / jnp.float32(n_rows * dim)
    # straight-through estimator: forward value equals `quantize`
    return quantize, diff, embed_ind


def _reference(x, embed):
    dim, n_embed = embed.shape
    flat = x.reshape(-1, dim)
    dist = (
        jnp.sum(flat**2, axis=1, keepdims=True)
        - 2.0 * flat @ embed
        + jnp.sum(embed**2, axis=0, keepdims=True)
    )
    ind = jnp.argmin(dist, axis=1)
    q = embed.T[ind].reshape(x.shape)
    diff = jnp.mean((q - x) ** 2)
    return q, diff, ind.reshape(x.shape[:-1])


def _check(x, embed, **kw):
    quantize, diff, embed_ind = quantize_forward(x, embed, **kw)
    jax.block_until_ready((quantize, diff, embed_ind))
    q_ref, d_ref, i_ref = _reference(x, embed)
    assert jnp.array_equal(embed_ind, i_ref)
    assert jnp.allclose(quantize, q_ref, atol=1e-5, rtol=1e-5)
    assert jnp.allclose(diff, d_ref, atol=1e-5, rtol=1e-5)


if __name__ == "__main__":
    dim, n_embed = 32, 64

    key = jax.random.PRNGKey(0)
    kx, ke, kx2 = jax.random.split(key, 3)
    embed = jax.random.normal(ke, (dim, n_embed), dtype=jnp.float32)  # torch.randn(dim, n_embed)

    # main case: (2, 8, 8, 32) -> 128 rows, single tile
    x = jax.random.normal(kx, (2, 8, 8, dim), dtype=jnp.float32)
    _check(x, embed)

    # multi-tile case (exercises the "parallel" grid + per-tile SSE partials)
    _check(x, embed, tile_n=32)

    # ragged row count (exercises row padding + masked SSE)
    x2 = jax.random.normal(kx2, (2, 5, 5, dim), dtype=jnp.float32)
    _check(x2, embed)

    print("KERNEL_OK")
</pallas_src>

<mosaic_0001>
module attributes {stable_mosaic.version = 11 : i64} {
  func.func @_quantize_kernel(%arg0: i32, %arg1: memref<128x32xf32, #tpu.memory_space<vmem>>, %arg2: memref<32x128xf32, #tpu.memory_space<vmem>>, %arg3: memref<1x128xf32, #tpu.memory_space<vmem>>, %arg4: memref<128x32xf32, #tpu.memory_space<vmem>>, %arg5: memref<128x1xi32, #tpu.memory_space<vmem>>, %arg6: memref<1x1x32xf32, #tpu.memory_space<vmem>>) attributes {dimension_semantics = [#tpu.dimension_semantics<parallel>], iteration_bounds = array<i64: 1>, scalar_prefetch = 0 : i64, scratch_operands = 0 : i64, tpu.core_type = #tpu.core_type<tc>, window_params = [{transform_indices = @transform_0, window_bounds = array<i64: 128, 32>}, {pipeline_mode = #tpu.pipeline_mode<synchronous>, transform_indices = @transform_1, window_bounds = array<i64: 32, 128>}, {pipeline_mode = #tpu.pipeline_mode<synchronous>, transform_indices = @transform_2, window_bounds = array<i64: 1, 128>}, {transform_indices = @transform_3, window_bounds = array<i64: 128, 32>}, {transform_indices = @transform_4, window_bounds = array<i64: 128, 1>}, {transform_indices = @transform_5, window_bounds = array<i64: 1, 1, 32>}]} {
    %c0 = arith.constant 0 : index
    %c0_0 = arith.constant 0 : index
    %0 = vector.load %arg1[%c0, %c0_0] : memref<128x32xf32, #tpu.memory_space<vmem>>, vector<128x32xf32>
    %c0_1 = arith.constant 0 : index
    %c0_2 = arith.constant 0 : index
    %1 = vector.load %arg2[%c0_1, %c0_2] : memref<32x128xf32, #tpu.memory_space<vmem>>, vector<32x128xf32>
    %c0_3 = arith.constant 0 : index
    %c0_4 = arith.constant 0 : index
    %2 = vector.load %arg3[%c0_3, %c0_4] : memref<1x128xf32, #tpu.memory_space<vmem>>, vector<1x128xf32>
    %cst = arith.constant dense<0.000000e+00> : vector<128x128xf32>
    %3 = tpu.matmul %0, %1, %cst {dimension_numbers = #tpu.dot_dimension_numbers<[1], [0], [0], [1], [0, 0, 1, 1], [], []>} : vector<128x32xf32>, vector<32x128xf32>, vector<128x128xf32> -> vector<128x128xf32>
    %cst_5 = arith.constant 2.000000e+00 : f32
    %4 = vector.broadcast %cst_5 : f32 to vector<128x128xf32>
    %5 = arith.mulf %4, %3 : vector<128x128xf32>
    %6 = vector.broadcast %2 : vector<1x128xf32> to vector<128x128xf32>
    %7 = arith.subf %6, %5 : vector<128x128xf32>
    %8 = tpu.iota {dimensions = array<i32: 1>} : vector<128x128xi32>
    %cst_6 = arith.constant dense<0x7F800000> : vector<128xf32>
    %9 = vector.multi_reduction <minimumf>, %7, %cst_6 [1] : vector<128x128xf32> to vector<128xf32>
    %10 = vector.shape_cast %9 : vector<128xf32> to vector<128x1xf32>
    %11 = vector.broadcast %10 : vector<128x1xf32> to vector<128x128xf32>
    %12 = arith.cmpf oeq, %7, %11 : vector<128x128xf32>
    %c128_i32 = arith.constant 128 : i32
    %13 = vector.broadcast %c128_i32 : i32 to vector<128x128xi32>
    %14 = arith.select %12, %8, %13 : vector<128x128xi1>, vector<128x128xi32>
    %cst_7 = arith.constant dense<2147483647> : vector<128xi32>
    %15 = vector.multi_reduction <minsi>, %14, %cst_7 [1] : vector<128x128xi32> to vector<128xi32>
    %16 = vector.shape_cast %15 : vector<128xi32> to vector<128x1xi32>
    %17 = vector.broadcast %16 : vector<128x1xi32> to vector<128x128xi32>
    %18 = arith.cmpi eq, %8, %17 : vector<128x128xi32>
    %19 = arith.extui %18 : vector<128x128xi1> to vector<128x128xi32>
    %20 = arith.sitofp %19 : vector<128x128xi32> to vector<128x128xf32>
    %cst_8 = arith.constant dense<0.000000e+00> : vector<128x32xf32>
    %21 = tpu.matmul %20, %1, %cst_8 {dimension_numbers = #tpu.dot_dimension_numbers<[1], [1], [0], [0], [0, 0, 1, 0], [], []>} : vector<128x128xf32>, vector<32x128xf32>, vector<128x32xf32> -> vector<128x32xf32>
    %c0_9 = arith.constant 0 : index
    %c0_10 = arith.constant 0 : index
    %22 = vector.load %arg5[%c0_9, %c0_10] : memref<128x1xi32, #tpu.memory_space<vmem>>, vector<128x1xi32>
    tpu.vector_store %arg5[%c0_9, %c0_10], %16 {strides = array<i32>} : memref<128x1xi32, #tpu.memory_space<vmem>>, vector<128x1xi32>,
    %c0_11 = arith.constant 0 : index
    %c0_12 = arith.constant 0 : index
    %23 = vector.load %arg4[%c0_11, %c0_12] : memref<128x32xf32, #tpu.memory_space<vmem>>, vector<128x32xf32>
    tpu.vector_store %arg4[%c0_11, %c0_12], %21 {strides = array<i32>} : memref<128x32xf32, #tpu.memory_space<vmem>>, vector<128x32xf32>,
    %24 = arith.subf %21, %0 : vector<128x32xf32>
    %25 = arith.mulf %24, %24 : vector<128x32xf32>
    %cst_13 = arith.constant dense<0.000000e+00> : vector<32xf32>
    %26 = vector.multi_reduction <add>, %25, %cst_13 [0] : vector<128x32xf32> to vector<32xf32>
    %27 = vector.shape_cast %26 : vector<32xf32> to vector<1x32xf32>
    %28 = vector.shape_cast %27 : vector<1x32xf32> to vector<1x1x32xf32>
    %c0_14 = arith.constant 0 : index
    %c0_15 = arith.constant 0 : index
    %c0_16 = arith.constant 0 : index
    %29 = vector.load %arg6[%c0_14, %c0_15, %c0_16] : memref<1x1x32xf32, #tpu.memory_space<vmem>>, vector<1x1x32xf32>
    tpu.vector_store %arg6[%c0_14, %c0_15, %c0_16], %28 {strides = array<i32>} : memref<1x1x32xf32, #tpu.memory_space<vmem>>, vector<1x1x32xf32>,
    return
  }
  func.func @transform_0(%arg0: i32) -> (i32, i32) {
    %c0_i32 = arith.constant 0 : i32
    %c0_i32_0 = arith.constant 0 : i32
    return %arg0, %c0_i32 : i32, i32
  }
  func.func @transform_1(%arg0: i32) -> (i32, i32) {
    %c0_i32 = arith.constant 0 : i32
    %c0_i32_0 = arith.constant 0 : i32
    %c0_i32_1 = arith.constant 0 : i32
    return %c0_i32, %c0_i32_0 : i32, i32
  }
  func.func @transform_2(%arg0: i32) -> (i32, i32) {
    %c0_i32 = arith.constant 0 : i32
    %c0_i32_0 = arith.constant 0 : i32
    %c0_i32_1 = arith.constant 0 : i32
    return %c0_i32, %c0_i32_0 : i32, i32
  }
  func.func @transform_3(%arg0: i32) -> (i32, i32) {
    %c0_i32 = arith.constant 0 : i32
    %c0_i32_0 = arith.constant 0 : i32
    return %arg0, %c0_i32 : i32, i32
  }
  func.func @transform_4(%arg0: i32) -> (i32, i32) {
    %c0_i32 = arith.constant 0 : i32
    %c0_i32_0 = arith.constant 0 : i32
    return %arg0, %c0_i32 : i32, i32
  }
  func.func @transform_5(%arg0: i32) -> (i32, i32, i32) {
    %c0_i32 = arith.constant 0 : i32
    %c0_i32_0 = arith.constant 0 : i32
    %c0_i32_1 = arith.constant 0 : i32
    return %arg0, %c0_i32, %c0_i32_0 : i32, i32, i32
  }
}

</mosaic_0001>

<llo_original>
// kernel: squeeze.1
$region0: #{squeeze.1}
  %s0 = inlined_call_operand.vmem [shape: s32[128], index: 0, kind: input, shape index: {}]
  %s1 = inlined_call_operand.hbm [shape: s32[2,8,8], index: 1, kind: output, shape index: {}]
  $region1: #{squeeze.1} parent=0
    #allocation0 [shape = 'u8[8192]{0}', space=vmem, size = 0x2000, scoped, tag = 'operand span for operand 1']
    #allocation1 [shape = 's32[1]{0}', space=sflag, size = 0x4, scoped, tag = 'scoped memory for squeeze.1']
    #allocation2 [shape = 'u8[4096]{0}', space=vmem, size = 0x1000, scoped, tag = 'scoped mem for input reshape']
    %2 = vsyncpa [#allocation1], 0
    %s4 = sshllo.u32 0, 1
    %v5 = vld [vmem:[%s0] sm:%s4]
    %6 = vst [vmem:[#allocation2] sm:%s4] %v5
    %v7 = vld [vmem:[#allocation2] sm:$0x1]
    %vm8 = vcmask 64512
    %9 = vst.msk [vmem:[#allocation0] sm:$0x1] %vm8, %v7
    %v10 = vld [vmem:[#allocation2] sm:$0x1]
    %11 = vrot.lane.b32.xlu0 %v10, 120
    %v12 = vpop.permute.xlu0 %11
    %vm13 = vcmask 64512
    %s14 = scalar_lea.vmem [#allocation0], 1
    %15 = vst.msk [vmem:[%s14] sm:$0x1] %vm13, %v12
    %v16 = vld [vmem:[#allocation2] sm:$0x1]
    %17 = vrot.lane.b32.xlu0 %v16, 112
    %v18 = vpop.permute.xlu0 %17
    %vm19 = vcmask 64512
    %s20 = scalar_lea.vmem [#allocation0], 2
    %21 = vst.msk [vmem:[%s20] sm:$0x1] %vm19, %v18
    %v22 = vld [vmem:[#allocation2] sm:$0x1]
    %23 = vrot.lane.b32.xlu0 %v22, 104
    %v24 = vpop.permute.xlu0 %23
    %vm25 = vcmask 64512
    %s26 = scalar_lea.vmem [#allocation0], 3
    %27 = vst.msk [vmem:[%s26] sm:$0x1] %vm25, %v24
    %v28 = vld [vmem:[#allocation2] sm:$0x1]
    %29 = vrot.lane.b32.xlu0 %v28, 96
    %v30 = vpop.permute.xlu0 %29
    %vm31 = vcmask 64512
    %s32 = scalar_lea.vmem [#allocation0], 4
    %33 = vst.msk [vmem:[%s32] sm:$0x1] %vm31, %v30
    %v34 = vld [vmem:[#allocation2] sm:$0x1]
    %35 = vrot.lane.b32.xlu0 %v34, 88
    %v36 = vpop.permute.xlu0 %35
    %vm37 = vcmask 64512
    %s38 = scalar_lea.vmem [#allocation0], 5
    %39 = vst.msk [vmem:[%s38] sm:$0x1] %vm37, %v36
    %v40 = vld [vmem:[#allocation2] sm:$0x1]
    %41 = vrot.lane.b32.xlu0 %v40, 80
    %v42 = vpop.permute.xlu0 %41
    %vm43 = vcmask 64512
    %s44 = scalar_lea.vmem [#allocation0], 6
    %45 = vst.msk [vmem:[%s44] sm:$0x1] %vm43, %v42
    %v46 = vld [vmem:[#allocation2] sm:$0x1]
    %47 = vrot.lane.b32.xlu0 %v46, 72
    %v48 = vpop.permute.xlu0 %47
    %vm49 = vcmask 64512
    %s50 = scalar_lea.vmem [#allocation0], 7
    %51 = vst.msk [vmem:[%s50] sm:$0x1] %vm49, %v48
    %v52 = vld [vmem:[#allocation2] sm:$0x1]
    %53 = vrot.lane.b32.xlu0 %v52, 64
    %v54 = vpop.permute.xlu0 %53
    %vm55 = vcmask 64512
    %s56 = scalar_lea.vmem [#allocation0], 8
    %57 = vst.msk [vmem:[%s56] sm:$0x1] %vm55, %v54
    %v58 = vld [vmem:[#allocation2] sm:$0x1]
    %59 = vrot.lane.b32.xlu0 %v58, 56
    %v60 = vpop.permute.xlu0 %59
    %vm61 = vcmask 64512
    %s62 = scalar_lea.vmem [#allocation0], 9
    %63 = vst.msk [vmem:[%s62] sm:$0x1] %vm61, %v60
    %v64 = vld [vmem:[#allocation2] sm:$0x1]
    %65 = vrot.lane.b32.xlu0 %v64, 48
    %v66 = vpop.permute.xlu0 %65
    %vm67 = vcmask 64512
    %s68 = scalar_lea.vmem [#allocation0], 10
    %69 = vst.msk [vmem:[%s68] sm:$0x1] %vm67, %v66
    %v70 = vld [vmem:[#allocation2] sm:$0x1]
    %71 = vrot.lane.b32.xlu0 %v70, 40
    %v72 = vpop.permute.xlu0 %71
    %vm73 = vcmask 64512
    %s74 = scalar_lea.vmem [#allocation0], 11
    %75 = vst.msk [vmem:[%s74] sm:$0x1] %vm73, %v72
    %v76 = vld [vmem:[#allocation2] sm:$0x1]
    %77 = vrot.lane.b32.xlu0 %v76, 32
    %v78 = vpop.permute.xlu0 %77
    %vm79 = vcmask 64512
    %s80 = scalar_lea.vmem [#allocation0], 12
    %81 = vst.msk [vmem:[%s80] sm:$0x1] %vm79, %v78
    %v82 = vld [vmem:[#allocation2] sm:$0x1]
    %83 = vrot.lane.b32.xlu0 %v82, 24
    %v84 = vpop.permute.xlu0 %83
    %vm85 = vcmask 64512
    %s86 = scalar_lea.vmem [#allocation0], 13
    %87 = vst.msk [vmem:[%s86] sm:$0x1] %vm85, %v84
    %v88 = vld [vmem:[#allocation2] sm:$0x1]
    %89 = vrot.lane.b32.xlu0 %v88, 16
    %v90 = vpop.permute.xlu0 %89
    %vm91 = vcmask 64512
    %s92 = scalar_lea.vmem [#allocation0], 14
    %93 = vst.msk [vmem:[%s92] sm:$0x1] %vm91, %v90
    %v94 = vld [vmem:[#allocation2] sm:$0x1]
    %95 = vrot.lane.b32.xlu0 %v94, 8
    %v96 = vpop.permute.xlu0 %95
    %vm97 = vcmask 64512
    %s98 = scalar_lea.vmem [#allocation0], 15
    %99 = vst.msk [vmem:[%s98] sm:$0x1] %vm97, %v96
    %s101 = ssub.s32 256, 256
    %102 = vsyncadd [#allocation1], %s101
    %s104 = sshll.u32 [#allocation0], 4
    %s105 = int_to_ptr.vmem [resolvable:$true] %s104
    %107 = dma.vmem_to_hbm [thread:$0]  %s105, 256, %s1, [#allocation1]
    %108 = dma.done [#allocation1], 256
    %109 = vsyncpa [#allocation1], 1

// kernel: quantize_forward.1
$region0: #{quantize_forward.1}
  #allocation0 [shape = 'u32[]', space=smem, size = 0x4, offset = 0x4, fixed_abs, tag = 'smem constant byte address 0x4 - core index']
  #allocation1 [shape = 'u32[144,128]{1,0:T(1,128)}', space=vmem, size = 0x12000, scoped, tag = 'internal scratch']
  %s0 = inlined_call_operand.hbm [shape: f32[128,32], index: 0, kind: input, shape index: {}]
  %s1 = inlined_call_operand.vmem [shape: f32[32,128], index: 1, kind: input, shape index: {}]
  %s2 = inlined_call_operand.vmem [shape: f32[1,128], index: 2, kind: input, shape index: {}]
  %s3 = inlined_call_operand.hbm [shape: f32[128,32], index: 3, kind: output, shape index: {0}]
  %s4 = inlined_call_operand.vmem [shape: s32[128,1], index: 4, kind: output, shape index: {1}]
  %s5 = inlined_call_operand.vmem [shape: f32[1,1,32], index: 5, kind: output, shape index: {2}]
  %6 = xla_tuple %s3, %s4, %s5
  %s7 = sld [smem:[#allocation0]]
  $region42: #{quantize_forward.1} parent=0
    _
  %s9 = ssub.s32 1, %s7
  %s10 = scalar_select 0, %s9, %s7
  $region1: #{quantize_forward.1} parent=0
    #allocation2 [shape = 'u8[65536]{0}', space=vmem, size = 0x10000, scoped, tag = 'input window, operand 0, single buffered']
    #allocation3 [shape = 's32[1]{0}', space=sflag, size = 0x4, scoped, tag = 'scoped memory for quantize_forward.1']
    #allocation4 [shape = 's32[1]{0}', space=sflag, size = 0x4, scoped, tag = 'scoped memory for quantize_forward.1']
    #allocation5 [shape = 'u8[65536]{0}', space=vmem, size = 0x10000, scoped, tag = 'output window, operand 0, single buffered']
    %11 = vsyncpa [#allocation3], 0
    %12 = vsyncpa [#allocation4], 0
    // Predicated region
    $region2: #{quantize_forward.1} parent=1 // pred_check
      _
    $region3: #{quantize_forward.1} parent=1 // pred_check_branch
      %14 = sbr.rel (0) target = $region5
    $region4: #{quantize_forward.1} parent=1 // pred_region
      %s16 = ssub.s32 2048, 2048
      %17 = vsyncadd [#allocation3], %s16
      %s18 = sshll.u32 [#allocation2], 4
      %s19 = int_to_ptr.vmem [resolvable:$true] %s18
      %24 = dma.hbm_to_vmem [thread:$0]  %s0, 2048, %s19, [#allocation3], 128, 128, 8
    $region5: #{quantize_forward.1} parent=1 // pred_fallthru
      _
    // Predicated region
    $region6: #{quantize_forward.1} parent=1 // pred_check
      _
    $region7: #{quantize_forward.1} parent=1 // pred_check_branch
      %26 = sbr.rel (0) target = $region9
    $region8: #{quantize_forward.1} parent=1 // pred_region
      _
    $region9: #{quantize_forward.1} parent=1 // pred_fallthru
      _
    // Predicated region
    $region10: #{quantize_forward.1} parent=1 // pred_check
      _
    $region11: #{quantize_forward.1} parent=1 // pred_check_branch
      %28 = sbr.rel (0) target = $region13
    $region12: #{quantize_forward.1} parent=1 // pred_region
      _
    $region13: #{quantize_forward.1} parent=1 // pred_fallthru
      _
    // Predicated region
    $region14: #{quantize_forward.1} parent=1 // pred_check
      _
    $region15: #{quantize_forward.1} parent=1 // pred_check_branch
      %30 = sbr.rel (0) target = $region17
    $region16: #{quantize_forward.1} parent=1 // pred_region
      %31 = dma.done [#allocation3], 2048
    $region17: #{quantize_forward.1} parent=1 // pred_fallthru
      _
    %v32 = vld [vmem:[#allocation2] sm:$0xff]
    %v33 = vld [vmem:[#allocation2 + $0x8] sm:$0xff]
    %v34 = vld [vmem:[#allocation2 + $0x10] sm:$0xff]
    %v35 = vld [vmem:[#allocation2 + $0x18] sm:$0xff]
    %v36 = vld [vmem:[#allocation2 + $0x20] sm:$0xff]
    %v37 = vld [vmem:[#allocation2 + $0x28] sm:$0xff]
    %v38 = vld [vmem:[#allocation2 + $0x30] sm:$0xff]
    %v39 = vld [vmem:[#allocation2 + $0x38] sm:$0xff]
    %v40 = vld [vmem:[#allocation2 + $0x40] sm:$0xff]
    %v41 = vld [vmem:[#allocation2 + $0x48] sm:$0xff]
    %v42 = vld [vmem:[#allocation2 + $0x50] sm:$0xff]
    %v43 = vld [vmem:[#allocation2 + $0x58] sm:$0xff]
    %v44 = vld [vmem:[#allocation2 + $0x60] sm:$0xff]
    %v45 = vld [vmem:[#allocation2 + $0x68] sm:$0xff]
    %v46 = vld [vmem:[#allocation2 + $0x70] sm:$0xff]
    %v47 = vld [vmem:[#allocation2 + $0x78] sm:$0xff]
    %v48 = vld [vmem:[%s1] sm:$0xff]
    %v49 = vld [vmem:[%s1 + $0x8] sm:$0xff]
    %v50 = vld [vmem:[%s1 + $0x10] sm:$0xff]
    %v51 = vld [vmem:[%s1 + $0x18] sm:$0xff]
    %v52 = vld [vmem:[%s2] sm:$0x1]
    %vm53 = vcmask 261120
    %v55 = vsel %vm53, %v32, 0
    %v58 = vsel %vm53, %v33, 0
    %v61 = vsel %vm53, %v34, 0
    %v64 = vsel %vm53, %v35, 0
    %v67 = vsel %vm53, %v36, 0
    %v70 = vsel %vm53, %v37, 0
    %v73 = vsel %vm53, %v38, 0
    %v76 = vsel %vm53, %v39, 0
    %v79 = vsel %vm53, %v40, 0
    %v82 = vsel %vm53, %v41, 0
    %v85 = vsel %vm53, %v42, 0
    %v88 = vsel %vm53, %v43, 0
    %v91 = vsel %vm53, %v44, 0
    %v94 = vsel %vm53, %v45, 0
    %v97 = vsel %vm53, %v46, 0
    %v100 = vsel %vm53, %v47, 0
    %102 = vmatprep.subr.mxu0 0.0
    %103 = vmatpush1.msra.mxu0 %v48
    %104 = vmatprep.subr.mxu0 0.0
    %105 = vmatpush1.msra.mxu0 %v49
    %106 = vmatprep.subr.mxu0 0.0
    %107 = vmatpush1.msra.mxu0 %v50
    %108 = vmatprep.subr.mxu0 0.0
    %109 = vmatpush1.msra.mxu0 %v51
    %110 = vmatprep.subr.mxu0 0.0
    %111 = vmatpush1.msra.mxu0 0.0
    %112 = vmatprep.subr.mxu0 0.0
    %113 = vmatpush1.msra.mxu0 0.0
    %114 = vmatprep.subr.mxu0 0.0
    %115 = vmatpush1.msra.mxu0 0.0
    %116 = vmatprep.subr.mxu0 0.0
    %117 = vmatpush1.msra.mxu0 0.0
    %118 = vmatprep.subr.mxu0 0.0
    %119 = vmatpush1.msra.mxu0 0.0
    %120 = vmatprep.subr.mxu0 0.0
    %121 = vmatpush1.msra.mxu0 0.0
    %122 = vmatprep.subr.mxu0 0.0
    %123 = vmatpush1.msra.mxu0 0.0
    %124 = vmatprep.subr.mxu0 0.0
    %125 = vmatpush1.msra.mxu0 0.0
    %126 = vmatprep.subr.mxu0 0.0
    %127 = vmatpush1.msra.mxu0 0.0
    %128 = vmatprep.subr.mxu0 0.0
    %129 = vmatpush1.msra.mxu0 0.0
    %130 = vmatprep.subr.mxu0 0.0
    %131 = vmatpush1.msra.mxu0 0.0
    %132 = vmatprep.subr.mxu0 0.0
    %133 = vmatpush1.msra.mxu0 0.0
    %134 = vmatprep.subr.mxu0 0.0
    %135 = vmatpush1.msra.mxu0 0.0
    %136 = vmatprep.subr.mxu0 0.0
    %137 = vmatpush1.msra.mxu0 0.0
    %138 = vmatprep.subr.mxu0 0.0
    %139 = vmatpush1.msra.mxu0 0.0
    %140 = vmatprep.subr.mxu0 0.0
    %141 = vmatpush1.msra.mxu0 0.0
    %142 = vmatprep.subr.mxu0 0.0
    %143 = vmatpush1.msra.mxu0 0.0
    %144 = vmatprep.subr.mxu0 0.0
    %145 = vmatpush1.msra.mxu0 0.0
    %146 = vmatprep.subr.mxu0 0.0
    %147 = vmatpush1.msra.mxu0 0.0
    %148 = vmatprep.subr.mxu0 0.0
    %149 = vmatpush1.msra.mxu0 0.0
    %150 = vmatprep.subr.mxu0 0.0
    %151 = vmatpush1.msra.mxu0 0.0
    %152 = vmatprep.subr.mxu0 0.0
    %153 = vmatpush1.msra.mxu0 0.0
    %154 = vmatprep.subr.mxu0 0.0
    %155 = vmatpush1.msra.mxu0 0.0
    %156 = vmatprep.subr.mxu0 0.0
    %157 = vmatpush1.msra.mxu0 0.0
    %158 = vmatprep.subr.mxu0 0.0
    %159 = vmatpush1.msra.mxu0 0.0
    %160 = vmatprep.subr.mxu0 0.0
    %161 = vmatpush1.msra.mxu0 0.0
    %162 = vmatprep.subr.mxu0 0.0
    %163 = vmatpush1.msra.mxu0 0.0
    %164 = vmatprep.subr.mxu0 0.0
    %165 = vmatpush1.msra.mxu0 0.0
    %166 = vmatprep.mubr.f32.mxu0 0.0
    %167 = vmatmul.mubr.f32.gmra.mrb[0].mxu0 %v55
    %v168 = vpop.f32.mrb[0].mxu0
    %v169 = vadd.f32 0.0, %v168
    %v170 = vpop.f32.mrb[0].mxu0
    %171 = vmatprep.mubr.f32.mxu0 0.0
    %172 = vmatmul.mubr.f32.gmra.mrb[0].mxu0 %v58
    %v173 = vpop.f32.mrb[0].mxu0
    %v174 = vadd.f32 0.0, %v173
    %v175 = vpop.f32.mrb[0].mxu0
    %176 = vmatprep.mubr.f32.mxu0 0.0
    %177 = vmatmul.mubr.f32.gmra.mrb[0].mxu0 %v61
    %v178 = vpop.f32.mrb[0].mxu0
    %v179 = vadd.f32 0.0, %v178
    %v180 = vpop.f32.mrb[0].mxu0
    %181 = vmatprep.mubr.f32.mxu0 0.0
    %182 = vmatmul.mubr.f32.gmra.mrb[0].mxu0 %v64
    %v183 = vpop.f32.mrb[0].mxu0
    %v184 = vadd.f32 0.0, %v183
    %v185 = vpop.f32.mrb[0].mxu0
    %186 = vmatprep.mubr.f32.mxu0 0.0
    %187 = vmatmul.mubr.f32.gmra.mrb[0].mxu0 %v67
    %v188 = vpop.f32.mrb[0].mxu0
    %v189 = vadd.f32 0.0, %v188
    %v190 = vpop.f32.mrb[0].mxu0
    %191 = vmatprep.mubr.f32.mxu0 0.0
    %192 = vmatmul.mubr.f32.gmra.mrb[0].mxu0 %v70
    %v193 = vpop.f32.mrb[0].mxu0
    %v194 = vadd.f32 0.0, %v193
    %v195 = vpop.f32.mrb[0].mxu0
    %196 = vmatprep.mubr.f32.mxu0 0.0
    %197 = vmatmul.mubr.f32.gmra.mrb[0].mxu0 %v73
    %v198 = vpop.f32.mrb[0].mxu0
    %v199 = vadd.f32 0.0, %v198
    %v200 = vpop.f32.mrb[0].mxu0
    %201 = vmatprep.mubr.f32.mxu0 0.0
    %202 = vmatmul.mubr.f32.gmra.mrb[0].mxu0 %v76
    %v203 = vpop.f32.mrb[0].mxu0
    %v204 = vadd.f32 0.0, %v203
    %v205 = vpop.f32.mrb[0].mxu0
    %206 = vmatprep.mubr.f32.mxu0 0.0
    %207 = vmatmul.mubr.f32.gmra.mrb[0].mxu0 %v79
    %v208 = vpop.f32.mrb[0].mxu0
    %v209 = vadd.f32 0.0, %v208
    %v210 = vpop.f32.mrb[0].mxu0
    %211 = vmatprep.mubr.f32.mxu0 0.0
    %212 = vmatmul.mubr.f32.gmra.mrb[0].mxu0 %v82
    %v213 = vpop.f32.mrb[0].mxu0
    %v214 = vadd.f32 0.0, %v213
    %v215 = vpop.f32.mrb[0].mxu0
    %216 = vmatprep.mubr.f32.mxu0 0.0
    %217 = vmatmul.mubr.f32.gmra.mrb[0].mxu0 %v85
    %v218 = vpop.f32.mrb[0].mxu0
    %v219 = vadd.f32 0.0, %v218
    %v220 = vpop.f32.mrb[0].mxu0
    %221 = vmatprep.mubr.f32.mxu0 0.0
    %222 = vmatmul.mubr.f32.gmra.mrb[0].mxu0 %v88
    %v223 = vpop.f32.mrb[0].mxu0
    %v224 = vadd.f32 0.0, %v223
    %v225 = vpop.f32.mrb[0].mxu0
    %226 = vmatprep.mubr.f32.mxu0 0.0
    %227 = vmatmul.mubr.f32.gmra.mrb[0].mxu0 %v91
    %v228 = vpop.f32.mrb[0].mxu0
    %v229 = vadd.f32 0.0, %v228
    %v230 = vpop.f32.mrb[0].mxu0
    %231 = vmatprep.mubr.f32.mxu0 0.0
    %232 = vmatmul.mubr.f32.gmra.mrb[0].mxu0 %v94
    %v233 = vpop.f32.mrb[0].mxu0
    %v234 = vadd.f32 0.0, %v233
    %v235 = vpop.f32.mrb[0].mxu0
    %236 = vmatprep.mubr.f32.mxu0 0.0
    %237 = vmatmul.mubr.f32.gmra.mrb[0].mxu0 %v97
    %v238 = vpop.f32.mrb[0].mxu0
    %v239 = vadd.f32 0.0, %v238
    %v240 = vpop.f32.mrb[0].mxu0
    %241 = vmatprep.mubr.f32.mxu0 0.0
    %242 = vmatmul.mubr.f32.gmra.mrb[0].mxu0 %v100
    %v243 = vpop.f32.mrb[0].mxu0
    %v244 = vadd.f32 0.0, %v243
    %v245 = vpop.f32.mrb[0].mxu0
    %246 = vdwg.mxu0
    %v247 = vmul.f32 %v169, 2.0
    %v248 = vmul.f32 %v174, 2.0
    %v249 = vmul.f32 %v179, 2.0
    %v250 = vmul.f32 %v184, 2.0
    %v251 = vmul.f32 %v189, 2.0
    %v252 = vmul.f32 %v194, 2.0
    %v253 = vmul.f32 %v199, 2.0
    %v254 = vmul.f32 %v204, 2.0
    %v255 = vmul.f32 %v209, 2.0
    %v256 = vmul.f32 %v214, 2.0
    %v257 = vmul.f32 %v219, 2.0
    %v258 = vmul.f32 %v224, 2.0
    %v259 = vmul.f32 %v229, 2.0
    %v260 = vmul.f32 %v234, 2.0
    %v261 = vmul.f32 %v239, 2.0
    %v262 = vmul.f32 %v244, 2.0
    %v264 = vlaneseq
    %v265 = vshrl.u32 %v264, 7
    %v266 = vsub.s32 0, %v265
    %v267 = vrot.slane %v52, %v266
    %v269 = vsub.f32 %v267, %v247
    %v270 = vsub.f32 %v267, %v248
    %v271 = vsub.f32 %v267, %v249
    %v272 = vsub.f32 %v267, %v250
    %v273 = vsub.f32 %v267, %v251
    %v274 = vsub.f32 %v267, %v252
    %v275 = vsub.f32 %v267, %v253
    %v276 = vsub.f32 %v267, %v254
    %v277 = vsub.f32 %v267, %v255
    %v278 = vsub.f32 %v267, %v256
    %v279 = vsub.f32 %v267, %v257
    %v280 = vsub.f32 %v267, %v258
    %v281 = vsub.f32 %v267, %v259
    %v282 = vsub.f32 %v267, %v260
    %v283 = vsub.f32 %v267, %v261
    %v284 = vsub.f32 %v267, %v262
    %v285 = vlaneseq
    %v286 = vand.u32 %v285, 127
    %287 = vmin.xlane.f32.xlu0 %v269
    %v288 = vpop.xlane.xlu0 %287
    %289 = vmin.xlane.f32.xlu0 %v270
    %v290 = vpop.xlane.xlu0 %289
    %291 = vmin.xlane.f32.xlu0 %v271
    %v292 = vpop.xlane.xlu0 %291
    %293 = vmin.xlane.f32.xlu0 %v272
    %v294 = vpop.xlane.xlu0 %293
    %295 = vmin.xlane.f32.xlu0 %v273
    %v296 = vpop.xlane.xlu0 %295
    %297 = vmin.xlane.f32.xlu0 %v274
    %v298 = vpop.xlane.xlu0 %297
    %299 = vmin.xlane.f32.xlu0 %v275
    %v300 = vpop.xlane.xlu0 %299
    %301 = vmin.xlane.f32.xlu0 %v276
    %v302 = vpop.xlane.xlu0 %301
    %303 = vmin.xlane.f32.xlu0 %v277
    %v304 = vpop.xlane.xlu0 %303
    %305 = vmin.xlane.f32.xlu0 %v278
    %v306 = vpop.xlane.xlu0 %305
    %307 = vmin.xlane.f32.xlu0 %v279
    %v308 = vpop.xlane.xlu0 %307
    %309 = vmin.xlane.f32.xlu0 %v280
    %v310 = vpop.xlane.xlu0 %309
    %311 = vmin.xlane.f32.xlu0 %v281
    %v312 = vpop.xlane.xlu0 %311
    %313 = vmin.xlane.f32.xlu0 %v282
    %v314 = vpop.xlane.xlu0 %313
    %315 = vmin.xlane.f32.xlu0 %v283
    %v316 = vpop.xlane.xlu0 %315
    %317 = vmin.xlane.f32.xlu0 %v284
    %v318 = vpop.xlane.xlu0 %317
    %vm319 = vcmp.eq.f32.partialorder %v269, %v288
    %vm320 = vcmp.eq.f32.partialorder %v270, %v290
    %vm321 = vcmp.eq.f32.partialorder %v271, %v292
    %vm322 = vcmp.eq.f32.partialorder %v272, %v294
    %vm323 = vcmp.eq.f32.partialorder %v273, %v296
    %vm324 = vcmp.eq.f32.partialorder %v274, %v298
    %vm325 = vcmp.eq.f32.partialorder %v275, %v300
    %vm326 = vcmp.eq.f32.partialorder %v276, %v302
    %vm327 = vcmp.eq.f32.partialorder %v277, %v304
    %vm328 = vcmp.eq.f32.partialorder %v278, %v306
    %vm329 = vcmp.eq.f32.partialorder %v279, %v308
    %vm330 = vcmp.eq.f32.partialorder %v280, %v310
    %vm331 = vcmp.eq.f32.partialorder %v281, %v312
    %vm332 = vcmp.eq.f32.partialorder %v282, %v314
    %vm333 = vcmp.eq.f32.partialorder %v283, %v316
    %vm334 = vcmp.eq.f32.partialorder %v284, %v318
    %v335 = vsel %vm319, %v286, 128
    %v336 = vsel %vm320, %v286, 128
    %v337 = vsel %vm321, %v286, 128
    %v338 = vsel %vm322, %v286, 128
    %v339 = vsel %vm323, %v286, 128
    %v340 = vsel %vm324, %v286, 128
    %v341 = vsel %vm325, %v286, 128
    %v342 = vsel %vm326, %v286, 128
    %v343 = vsel %vm327, %v286, 128
    %v344 = vsel %vm328, %v286, 128
    %v345 = vsel %vm329, %v286, 128
    %v346 = vsel %vm330, %v286, 128
    %v347 = vsel %vm331, %v286, 128
    %v348 = vsel %vm332, %v286, 128
    %v349 = vsel %vm333, %v286, 128
    %v350 = vsel %vm334, %v286, 128
    %v351 = vand.u32 %v335, 65535
    %v352 = vshra.s32 %v335, 16
    %v353 = vcvt.s32.f32 %v351
    %v354 = vcvt.s32.f32 %v352
    %355 = vmin.xlane.f32.xlu0 %v354
    %v356 = vpop.xlane.xlu0 %355
    %vm357 = vcmp.eq.f32.partialorder %v354, %v356
    %v358 = vsel %vm357, %v353, inf
    %359 = vmin.xlane.f32.xlu0 %v358
    %v360 = vpop.xlane.xlu0 %359
    %v361 = vcvt.f32.s32 %v360
    %v362 = vcvt.f32.s32 %v356
    %v363 = vshll.u32 %v362, 16
    %v364 = vadd.s32 %v363, %v361
    %v365 = vand.u32 %v336, 65535
    %v366 = vshra.s32 %v336, 16
    %v367 = vcvt.s32.f32 %v365
    %v368 = vcvt.s32.f32 %v366
    %369 = vmin.xlane.f32.xlu0 %v368
    %v370 = vpop.xlane.xlu0 %369
    %vm371 = vcmp.eq.f32.partialorder %v368, %v370
    %v372 = vsel %vm371, %v367, inf
    %373 = vmin.xlane.f32.xlu0 %v372
    %v374 = vpop.xlane.xlu0 %373
    %v375 = vcvt.f32.s32 %v374
    %v376 = vcvt.f32.s32 %v370
    %v377 = vshll.u32 %v376, 16
    %v378 = vadd.s32 %v377, %v375
    %v379 = vand.u32 %v337, 65535
    %v380 = vshra.s32 %v337, 16
    %v381 = vcvt.s32.f32 %v379
    %v382 = vcvt.s32.f32 %v380
    %383 = vmin.xlane.f32.xlu0 %v382
    %v384 = vpop.xlane.xlu0 %383
    %vm385 = vcmp.eq.f32.partialorder %v382, %v384
    %v386 = vsel %vm385, %v381, inf
    %387 = vmin.xlane.f32.xlu0 %v386
    %v388 = vpop.xlane.xlu0 %387
    %v389 = vcvt.f32.s32 %v388
    %v390 = vcvt.f32.s32 %v384
    %v391 = vshll.u32 %v390, 16
    %v392 = vadd.s32 %v391, %v389
    %v393 = vand.u32 %v338, 65535
    %v394 = vshra.s32 %v338, 16
    %v395 = vcvt.s32.f32 %v393
    %v396 = vcvt.s32.f32 %v394
    %397 = vmin.xlane.f32.xlu0 %v396
    %v398 = vpop.xlane.xlu0 %397
    %vm399 = vcmp.eq.f32.partialorder %v396, %v398
    %v400 = vsel %vm399, %v395, inf
    %401 = vmin.xlane.f32.xlu0 %v400
    %v402 = vpop.xlane.xlu0 %401
    %v403 = vcvt.f32.s32 %v402
    %v404 = vcvt.f32.s32 %v398
    %v405 = vshll.u32 %v404, 16
    %v406 = vadd.s32 %v405, %v403
    %v407 = vand.u32 %v339, 65535
    %v408 = vshra.s32 %v339, 16
    %v409 = vcvt.s32.f32 %v407
    %v410 = vcvt.s32.f32 %v408
    %411 = vmin.xlane.f32.xlu0 %v410
    %v412 = vpop.xlane.xlu0 %411
    %vm413 = vcmp.eq.f32.partialorder %v410, %v412
    %v414 = vsel %vm413, %v409, inf
    %415 = vmin.xlane.f32.xlu0 %v414
    %v416 = vpop.xlane.xlu0 %415
    %v417 = vcvt.f32.s32 %v416
    %v418 = vcvt.f32.s32 %v412
    %v419 = vshll.u32 %v418, 16
    %v420 = vadd.s32 %v419, %v417
    %v421 = vand.u32 %v340, 65535
    %v422 = vshra.s32 %v340, 16
    %v423 = vcvt.s32.f32 %v421
    %v424 = vcvt.s32.f32 %v422
    %425 = vmin.xlane.f32.xlu0 %v424
    %v426 = vpop.xlane.xlu0 %425
    %vm427 = vcmp.eq.f32.partialorder %v424, %v426
    %v428 = vsel %vm427, %v423, inf
    %429 = vmin.xlane.f32.xlu0 %v428
    %v430 = vpop.xlane.xlu0 %429
    %v431 = vcvt.f32.s32 %v430
    %v432 = vcvt.f32.s32 %v426
    %v433 = vshll.u32 %v432, 16
    %v434 = vadd.s32 %v433, %v431
    %v435 = vand.u32 %v341, 65535
    %v436 = vshra.s32 %v341, 16
    %v437 = vcvt.s32.f32 %v435
    %v438 = vcvt.s32.f32 %v436
    %439 = vmin.xlane.f32.xlu0 %v438
    %v440 = vpop.xlane.xlu0 %439
    %vm441 = vcmp.eq.f32.partialorder %v438, %v440
    %v442 = vsel %vm441, %v437, inf
    %443 = vmin.xlane.f32.xlu0 %v442
    %v444 = vpop.xlane.xlu0 %443
    %v445 = vcvt.f32.s32 %v444
    %v446 = vcvt.f32.s32 %v440
    %v447 = vshll.u32 %v446, 16
    %v448 = vadd.s32 %v447, %v445
    %v449 = vand.u32 %v342, 65535
    %v450 = vshra.s32 %v342, 16
    %v451 = vcvt.s32.f32 %v449
    %v452 = vcvt.s32.f32 %v450
    %453 = vmin.xlane.f32.xlu0 %v452
    %v454 = vpop.xlane.xlu0 %453
    %vm455 = vcmp.eq.f32.partialorder %v452, %v454
    %v456 = vsel %vm455, %v451, inf
    %457 = vmin.xlane.f32.xlu0 %v456
    %v458 = vpop.xlane.xlu0 %457
    %v459 = vcvt.f32.s32 %v458
    %v460 = vcvt.f32.s32 %v454
    %v461 = vshll.u32 %v460, 16
    %v462 = vadd.s32 %v461, %v459
    %v463 = vand.u32 %v343, 65535
    %v464 = vshra.s32 %v343, 16
    %v465 = vcvt.s32.f32 %v463
    %v466 = vcvt.s32.f32 %v464
    %467 = vmin.xlane.f32.xlu0 %v466
    %v468 = vpop.xlane.xlu0 %467
    %vm469 = vcmp.eq.f32.partialorder %v466, %v468
    %v470 = vsel %vm469, %v465, inf
    %471 = vmin.xlane.f32.xlu0 %v470
    %v472 = vpop.xlane.xlu0 %471
    %v473 = vcvt.f32.s32 %v472
    %v474 = vcvt.f32.s32 %v468
    %v475 = vshll.u32 %v474, 16
    %v476 = vadd.s32 %v475, %v473
    %v477 = vand.u32 %v344, 65535
    %v478 = vshra.s32 %v344, 16
    %v479 = vcvt.s32.f32 %v477
    %v480 = vcvt.s32.f32 %v478
    %481 = vmin.xlane.f32.xlu0 %v480
    %v482 = vpop.xlane.xlu0 %481
    %vm483 = vcmp.eq.f32.partialorder %v480, %v482
    %v484 = vsel %vm483, %v479, inf
    %485 = vmin.xlane.f32.xlu0 %v484
    %v486 = vpop.xlane.xlu0 %485
    %v487 = vcvt.f32.s32 %v486
    %v488 = vcvt.f32.s32 %v482
    %v489 = vshll.u32 %v488, 16
    %v490 = vadd.s32 %v489, %v487
    %v491 = vand.u32 %v345, 65535
    %v492 = vshra.s32 %v345, 16
    %v493 = vcvt.s32.f32 %v491
    %v494 = vcvt.s32.f32 %v492
    %495 = vmin.xlane.f32.xlu0 %v494
    %v496 = vpop.xlane.xlu0 %495
    %vm497 = vcmp.eq.f32.partialorder %v494, %v496
    %v498 = vsel %vm497, %v493, inf
    %499 = vmin.xlane.f32.xlu0 %v498
    %v500 = vpop.xlane.xlu0 %499
    %v501 = vcvt.f32.s32 %v500
    %v502 = vcvt.f32.s32 %v496
    %v503 = vshll.u32 %v502, 16
    %v504 = vadd.s32 %v503, %v501
    %v505 = vand.u32 %v346, 65535
    %v506 = vshra.s32 %v346, 16
    %v507 = vcvt.s32.f32 %v505
    %v508 = vcvt.s32.f32 %v506
    %509 = vmin.xlane.f32.xlu0 %v508
    %v510 = vpop.xlane.xlu0 %509
    %vm511 = vcmp.eq.f32.partialorder %v508, %v510
    %v512 = vsel %vm511, %v507, inf
    %513 = vmin.xlane.f32.xlu0 %v512
    %v514 = vpop.xlane.xlu0 %513
    %v515 = vcvt.f32.s32 %v514
    %v516 = vcvt.f32.s32 %v510
    %v517 = vshll.u32 %v516, 16
    %v518 = vadd.s32 %v517, %v515
    %v519 = vand.u32 %v347, 65535
    %v520 = vshra.s32 %v347, 16
    %v521 = vcvt.s32.f32 %v519
    %v522 = vcvt.s32.f32 %v520
    %523 = vmin.xlane.f32.xlu0 %v522
    %v524 = vpop.xlane.xlu0 %523
    %vm525 = vcmp.eq.f32.partialorder %v522, %v524
    %v526 = vsel %vm525, %v521, inf
    %527 = vmin.xlane.f32.xlu0 %v526
    %v528 = vpop.xlane.xlu0 %527
    %v529 = vcvt.f32.s32 %v528
    %v530 = vcvt.f32.s32 %v524
    %v531 = vshll.u32 %v530, 16
    %v532 = vadd.s32 %v531, %v529
    %v533 = vand.u32 %v348, 65535
    %v534 = vshra.s32 %v348, 16
    %v535 = vcvt.s32.f32 %v533
    %v536 = vcvt.s32.f32 %v534
    %537 = vmin.xlane.f32.xlu0 %v536
    %v538 = vpop.xlane.xlu0 %537
    %vm539 = vcmp.eq.f32.partialorder %v536, %v538
    %v540 = vsel %vm539, %v535, inf
    %541 = vmin.xlane.f32.xlu0 %v540
    %v542 = vpop.xlane.xlu0 %541
    %v543 = vcvt.f32.s32 %v542
    %v544 = vcvt.f32.s32 %v538
    %v545 = vshll.u32 %v544, 16
    %v546 = vadd.s32 %v545, %v543
    %v547 = vand.u32 %v349, 65535
    %v548 = vshra.s32 %v349, 16
    %v549 = vcvt.s32.f32 %v547
    %v550 = vcvt.s32.f32 %v548
    %551 = vmin.xlane.f32.xlu0 %v550
    %v552 = vpop.xlane.xlu0 %551
    %vm553 = vcmp.eq.f32.partialorder %v550, %v552
    %v554 = vsel %vm553, %v549, inf
    %555 = vmin.xlane.f32.xlu0 %v554
    %v556 = vpop.xlane.xlu0 %555
    %v557 = vcvt.f32.s32 %v556
    %v558 = vcvt.f32.s32 %v552
    %v559 = vshll.u32 %v558, 16
    %v560 = vadd.s32 %v559, %v557
    %v561 = vand.u32 %v350, 65535
    %v562 = vshra.s32 %v350, 16
    %v563 = vcvt.s32.f32 %v561
    %v564 = vcvt.s32.f32 %v562
    %565 = vmin.xlane.f32.xlu0 %v564
    %v566 = vpop.xlane.xlu0 %565
    %vm567 = vcmp.eq.f32.partialorder %v564, %v566
    %v568 = vsel %vm567, %v563, inf
    %569 = vmin.xlane.f32.xlu0 %v568
    %v570 = vpop.xlane.xlu0 %569
    %v571 = vcvt.f32.s32 %v570
    %v572 = vcvt.f32.s32 %v566
    %v573 = vshll.u32 %v572, 16
    %v574 = vadd.s32 %v573, %v571
    %vm575 = vcmp.eq.s32.totalorder %v286, %v364
    %vm576 = vcmp.eq.s32.totalorder %v286, %v378
    %vm577 = vcmp.eq.s32.totalorder %v286, %v392
    %vm578 = vcmp.eq.s32.totalorder %v286, %v406
    %vm579 = vcmp.eq.s32.totalorder %v286, %v420
    %vm580 = vcmp.eq.s32.totalorder %v286, %v434
    %vm581 = vcmp.eq.s32.totalorder %v286, %v448
    %vm582 = vcmp.eq.s32.totalorder %v286, %v462
    %vm583 = vcmp.eq.s32.totalorder %v286, %v476
    %vm584 = vcmp.eq.s32.totalorder %v286, %v490
    %vm585 = vcmp.eq.s32.totalorder %v286, %v504
    %vm586 = vcmp.eq.s32.totalorder %v286, %v518
    %vm587 = vcmp.eq.s32.totalorder %v286, %v532
    %vm588 = vcmp.eq.s32.totalorder %v286, %v546
    %vm589 = vcmp.eq.s32.totalorder %v286, %v560
    %vm590 = vcmp.eq.s32.totalorder %v286, %v574
    %v591 = vsel %vm575, 1, 0
    %v592 = vsel %vm576, 1, 0
    %v593 = vsel %vm577, 1, 0
    %v594 = vsel %vm578, 1, 0
    %v595 = vsel %vm579, 1, 0
    %v596 = vsel %vm580, 1, 0
    %v597 = vsel %vm581, 1, 0
    %v598 = vsel %vm582, 1, 0
    %v599 = vsel %vm583, 1, 0
    %v600 = vsel %vm584, 1, 0
    %v601 = vsel %vm585, 1, 0
    %v602 = vsel %vm586, 1, 0
    %v603 = vsel %vm587, 1, 0
    %v604 = vsel %vm588, 1, 0
    %v605 = vsel %vm589, 1, 0
    %v606 = vsel %vm590, 1, 0
    %v607 = vcvt.s32.f32 %v591
    %v608 = vcvt.s32.f32 %v592
    %v609 = vcvt.s32.f32 %v593
    %v610 = vcvt.s32.f32 %v594
    %v611 = vcvt.s32.f32 %v595
    %v612 = vcvt.s32.f32 %v596
    %v613 = vcvt.s32.f32 %v597
    %v614 = vcvt.s32.f32 %v598
    %v615 = vcvt.s32.f32 %v599
    %v616 = vcvt.s32.f32 %v600
    %v617 = vcvt.s32.f32 %v601
    %v618 = vcvt.s32.f32 %v602
    %v619 = vcvt.s32.f32 %v603
    %v620 = vcvt.s32.f32 %v604
    %v621 = vcvt.s32.f32 %v605
    %v622 = vcvt.s32.f32 %v606
    %623 = vmatprep.subr.mxu0 0.0
    %624 = vmatpush1.xpose.msra.mxu0 %v48
    %625 = vmatprep.subr.mxu0 0.0
    %626 = vmatpush1.xpose.msra.mxu0 %v49
    %627 = vmatprep.subr.mxu0 0.0
    %628 = vmatpush1.xpose.msra.mxu0 %v50
    %629 = vmatprep.subr.mxu0 0.0
    %630 = vmatpush1.xpose.msra.mxu0 %v51
    %631 = vmatprep.subr.mxu0 0.0
    %632 = vmatpush1.xpose.msra.mxu0 0.0
    %633 = vmatprep.subr.mxu0 0.0
    %634 = vmatpush1.xpose.msra.mxu0 0.0
    %635 = vmatprep.subr.mxu0 0.0
    %636 = vmatpush1.xpose.msra.mxu0 0.0
    %637 = vmatprep.subr.mxu0 0.0
    %638 = vmatpush1.xpose.msra.mxu0 0.0
    %639 = vmatprep.subr.mxu0 0.0
    %640 = vmatpush1.xpose.msra.mxu0 0.0
    %641 = vmatprep.subr.mxu0 0.0
    %642 = vmatpush1.xpose.msra.mxu0 0.0
    %643 = vmatprep.subr.mxu0 0.0
    %644 = vmatpush1.xpose.msra.mxu0 0.0
    %645 = vmatprep.subr.mxu0 0.0
    %646 = vmatpush1.xpose.msra.mxu0 0.0
    %647 = vmatprep.subr.mxu0 0.0
    %648 = vmatpush1.xpose.msra.mxu0 0.0
    %649 = vmatprep.subr.mxu0 0.0
    %650 = vmatpush1.xpose.msra.mxu0 0.0
    %651 = vmatprep.subr.mxu0 0.0
    %652 = vmatpush1.xpose.msra.mxu0 0.0
    %653 = vmatprep.subr.mxu0 0.0
    %654 = vmatpush1.xpose.msra.mxu0 0.0
    %655 = vmatprep.subr.mxu0 0.0
    %656 = vmatpush1.xpose.msra.mxu0 0.0
    %657 = vmatprep.subr.mxu0 0.0
    %658 = vmatpush1.xpose.msra.mxu0 0.0
    %659 = vmatprep.subr.mxu0 0.0
    %660 = vmatpush1.xpose.msra.mxu0 0.0
    %661 = vmatprep.subr.mxu0 0.0
    %662 = vmatpush1.xpose.msra.mxu0 0.0
    %663 = vmatprep.subr.mxu0 0.0
    %664 = vmatpush1.xpose.msra.mxu0 0.0
    %665 = vmatprep.subr.mxu0 0.0
    %666 = vmatpush1.xpose.msra.mxu0 0.0
    %667 = vmatprep.subr.mxu0 0.0
    %668 = vmatpush1.xpose.msra.mxu0 0.0
    %669 = vmatprep.subr.mxu0 0.0
    %670 = vmatpush1.xpose.msra.mxu0 0.0
    %671 = vmatprep.subr.mxu0 0.0
    %672 = vmatpush1.xpose.msra.mxu0 0.0
    %673 = vmatprep.subr.mxu0 0.0
    %674 = vmatpush1.xpose.msra.mxu0 0.0
    %675 = vmatprep.subr.mxu0 0.0
    %676 = vmatpush1.xpose.msra.mxu0 0.0
    %677 = vmatprep.subr.mxu0 0.0
    %678 = vmatpush1.xpose.msra.mxu0 0.0
    %679 = vmatprep.subr.mxu0 0.0
    %680 = vmatpush1.xpose.msra.mxu0 0.0
    %681 = vmatprep.subr.mxu0 0.0
    %682 = vmatpush1.xpose.msra.mxu0 0.0
    %683 = vmatprep.subr.mxu0 0.0
    %684 = vmatpush1.xpose.msra.mxu0 0.0
    %685 = vmatprep.subr.mxu0 0.0
    %686 = vmatpush1.xpose.msra.mxu0 0.0
    %687 = vmatprep.mubr.f32.mxu0 0.0
    %688 = vmatmul.mubr.f32.gmra.mrb[0].mxu0 %v607
    %v689 = vpop.f32.mrb[0].mxu0
    %v690 = vadd.f32 0.0, %v689
    %v691 = vpop.f32.mrb[0].mxu0
    %692 = vmatprep.mubr.f32.mxu0 0.0
    %693 = vmatmul.mubr.f32.gmra.mrb[0].mxu0 %v608
    %v694 = vpop.f32.mrb[0].mxu0
    %v695 = vadd.f32 0.0, %v694
    %v696 = vpop.f32.mrb[0].mxu0
    %697 = vmatprep.mubr.f32.mxu0 0.0
    %698 = vmatmul.mubr.f32.gmra.mrb[0].mxu0 %v609
    %v699 = vpop.f32.mrb[0].mxu0
    %v700 = vadd.f32 0.0, %v699
    %v701 = vpop.f32.mrb[0].mxu0
    %702 = vmatprep.mubr.f32.mxu0 0.0
    %703 = vmatmul.mubr.f32.gmra.mrb[0].mxu0 %v610
    %v704 = vpop.f32.mrb[0].mxu0
    %v705 = vadd.f32 0.0, %v704
    %v706 = vpop.f32.mrb[0].mxu0
    %707 = vmatprep.mubr.f32.mxu0 0.0
    %708 = vmatmul.mubr.f32.gmra.mrb[0].mxu0 %v611
    %v709 = vpop.f32.mrb[0].mxu0
    %v710 = vadd.f32 0.0, %v709
    %v711 = vpop.f32.mrb[0].mxu0
    %712 = vmatprep.mubr.f32.mxu0 0.0
    %713 = vmatmul.mubr.f32.gmra.mrb[0].mxu0 %v612
    %v714 = vpop.f32.mrb[0].mxu0
    %v715 = vadd.f32 0.0, %v714
    %v716 = vpop.f32.mrb[0].mxu0
    %717 = vmatprep.mubr.f32.mxu0 0.0
    %718 = vmatmul.mubr.f32.gmra.mrb[0].mxu0 %v613
    %v719 = vpop.f32.mrb[0].mxu0
    %v720 = vadd.f32 0.0, %v719
    %v721 = vpop.f32.mrb[0].mxu0
    %722 = vmatprep.mubr.f32.mxu0 0.0
    %723 = vmatmul.mubr.f32.gmra.mrb[0].mxu0 %v614
    %v724 = vpop.f32.mrb[0].mxu0
    %v725 = vadd.f32 0.0, %v724
    %v726 = vpop.f32.mrb[0].mxu0
    %727 = vmatprep.mubr.f32.mxu0 0.0
    %728 = vmatmul.mubr.f32.gmra.mrb[0].mxu0 %v615
    %v729 = vpop.f32.mrb[0].mxu0
    %v730 = vadd.f32 0.0, %v729
    %v731 = vpop.f32.mrb[0].mxu0
    %732 = vmatprep.mubr.f32.mxu0 0.0
    %733 = vmatmul.mubr.f32.gmra.mrb[0].mxu0 %v616
    %v734 = vpop.f32.mrb[0].mxu0
    %v735 = vadd.f32 0.0, %v734
    %v736 = vpop.f32.mrb[0].mxu0
    %737 = vmatprep.mubr.f32.mxu0 0.0
    %738 = vmatmul.mubr.f32.gmra.mrb[0].mxu0 %v617
    %v739 = vpop.f32.mrb[0].mxu0
    %v740 = vadd.f32 0.0, %v739
    %v741 = vpop.f32.mrb[0].mxu0
    %742 = vmatprep.mubr.f32.mxu0 0.0
    %743 = vmatmul.mubr.f32.gmra.mrb[0].mxu0 %v618
    %v744 = vpop.f32.mrb[0].mxu0
    %v745 = vadd.f32 0.0, %v744
    %v746 = vpop.f32.mrb[0].mxu0
    %747 = vmatprep.mubr.f32.mxu0 0.0
    %748 = vmatmul.mubr.f32.gmra.mrb[0].mxu0 %v619
    %v749 = vpop.f32.mrb[0].mxu0
    %v750 = vadd.f32 0.0, %v749
    %v751 = vpop.f32.mrb[0].mxu0
    %752 = vmatprep.mubr.f32.mxu0 0.0
    %753 = vmatmul.mubr.f32.gmra.mrb[0].mxu0 %v620
    %v754 = vpop.f32.mrb[0].mxu0
    %v755 = vadd.f32 0.0, %v754
    %v756 = vpop.f32.mrb[0].mxu0
    %757 = vmatprep.mubr.f32.mxu0 0.0
    %758 = vmatmul.mubr.f32.gmra.mrb[0].mxu0 %v621
    %v759 = vpop.f32.mrb[0].mxu0
    %v760 = vadd.f32 0.0, %v759
    %v761 = vpop.f32.mrb[0].mxu0
    %762 = vmatprep.mubr.f32.mxu0 0.0
    %763 = vmatmul.mubr.f32.gmra.mrb[0].mxu0 %v622
    %v764 = vpop.f32.mrb[0].mxu0
    %v765 = vadd.f32 0.0, %v764
    %v766 = vpop.f32.mrb[0].mxu0
    %767 = vdwg.mxu0
    %vm768 = vcmask 7168
    %769 = vst.msk [vmem:[%s4] sm:$0xff] %vm768, %v364
    %770 = vst.msk [vmem:[%s4 + $0x8] sm:$0xff] %vm768, %v378
    %771 = vst.msk [vmem:[%s4 + $0x10] sm:$0xff] %vm768, %v392
    %772 = vst.msk [vmem:[%s4 + $0x18] sm:$0xff] %vm768, %v406
    %773 = vst.msk [vmem:[%s4 + $0x20] sm:$0xff] %vm768, %v420
    %774 = vst.msk [vmem:[%s4 + $0x28] sm:$0xff] %vm768, %v434
    %775 = vst.msk [vmem:[%s4 + $0x30] sm:$0xff] %vm768, %v448
    %776 = vst.msk [vmem:[%s4 + $0x38] sm:$0xff] %vm768, %v462
    %777 = vst.msk [vmem:[%s4 + $0x40] sm:$0xff] %vm768, %v476
    %778 = vst.msk [vmem:[%s4 + $0x48] sm:$0xff] %vm768, %v490
    %779 = vst.msk [vmem:[%s4 + $0x50] sm:$0xff] %vm768, %v504
    %780 = vst.msk [vmem:[%s4 + $0x58] sm:$0xff] %vm768, %v518
    %781 = vst.msk [vmem:[%s4 + $0x60] sm:$0xff] %vm768, %v532
    %782 = vst.msk [vmem:[%s4 + $0x68] sm:$0xff] %vm768, %v546
    %783 = vst.msk [vmem:[%s4 + $0x70] sm:$0xff] %vm768, %v560
    %784 = vst.msk [vmem:[%s4 + $0x78] sm:$0xff] %vm768, %v574
    %785 = vst.msk [vmem:[#allocation5] sm:$0xff] %vm53, %v690
    %786 = vst.msk [vmem:[#allocation5 + $0x8] sm:$0xff] %vm53, %v695
    %787 = vst.msk [vmem:[#allocation5 + $0x10] sm:$0xff] %vm53, %v700
    %788 = vst.msk [vmem:[#allocation5 + $0x18] sm:$0xff] %vm53, %v705
    %789 = vst.msk [vmem:[#allocation5 + $0x20] sm:$0xff] %vm53, %v710
    %790 = vst.msk [vmem:[#allocation5 + $0x28] sm:$0xff] %vm53, %v715
    %791 = vst.msk [vmem:[#allocation5 + $0x30] sm:$0xff] %vm53, %v720
    %792 = vst.msk [vmem:[#allocation5 + $0x38] sm:$0xff] %vm53, %v725
    %793 = vst.msk [vmem:[#allocation5 + $0x40] sm:$0xff] %vm53, %v730
    %794 = vst.msk [vmem:[#allocation5 + $0x48] sm:$0xff] %vm53, %v735
    %795 = vst.msk [vmem:[#allocation5 + $0x50] sm:$0xff] %vm53, %v740
    %796 = vst.msk [vmem:[#allocation5 + $0x58] sm:$0xff] %vm53, %v745
    %797 = vst.msk [vmem:[#allocation5 + $0x60] sm:$0xff] %vm53, %v750
    %798 = vst.msk [vmem:[#allocation5 + $0x68] sm:$0xff] %vm53, %v755
    %799 = vst.msk [vmem:[#allocation5 + $0x70] sm:$0xff] %vm53, %v760
    %800 = vst.msk [vmem:[#allocation5 + $0x78] sm:$0xff] %vm53, %v765
    %v801 = vsub.f32 %v690, %v32
    %v802 = vsub.f32 %v695, %v33
    %v803 = vsub.f32 %v700, %v34
    %v804 = vsub.f32 %v705, %v35
    %v805 = vsub.f32 %v710, %v36
    %v806 = vsub.f32 %v715, %v37
    %v807 = vsub.f32 %v720, %v38
    %v808 = vsub.f32 %v725, %v39
    %v809 = vsub.f32 %v730, %v40
    %v810 = vsub.f32 %v735, %v41
    %v811 = vsub.f32 %v740, %v42
    %v812 = vsub.f32 %v745, %v43
    %v813 = vsub.f32 %v750, %v44
    %v814 = vsub.f32 %v755, %v45
    %v815 = vsub.f32 %v760, %v46
    %v816 = vsub.f32 %v765, %v47
    %v817 = vmul.f32 %v801, %v801
    %v818 = vmul.f32 %v802, %v802
    %v819 = vmul.f32 %v803, %v803
    %v820 = vmul.f32 %v804, %v804
    %v821 = vmul.f32 %v805, %v805
    %v822 = vmul.f32 %v806, %v806
    %v823 = vmul.f32 %v807, %v807
    %v824 = vmul.f32 %v808, %v808
    %v825 = vmul.f32 %v809, %v809
    %v826 = vmul.f32 %v810, %v810
    %v827 = vmul.f32 %v811, %v811
    %v828 = vmul.f32 %v812, %v812
    %v829 = vmul.f32 %v813, %v813
    %v830 = vmul.f32 %v814, %v814
    %v831 = vmul.f32 %v815, %v815
    %v832 = vmul.f32 %v816, %v816
    %v833 = vsel %vm53, %v817, 0.0
    %v834 = vsel %vm53, %v818, 0.0
    %v835 = vadd.f32 %v833, %v834
    %v836 = vsel %vm53, %v819, 0.0
    %v837 = vadd.f32 %v835, %v836
    %v838 = vsel %vm53, %v820, 0.0
    %v839 = vadd.f32 %v837, %v838
    %v840 = vsel %vm53, %v821, 0.0
    %v841 = vadd.f32 %v839, %v840
    %v842 = vsel %vm53, %v822, 0.0
    %v843 = vadd.f32 %v841, %v842
    %v844 = vsel %vm53, %v823, 0.0
    %v845 = vadd.f32 %v843, %v844
    %v846 = vsel %vm53, %v824, 0.0
    %v847 = vadd.f32 %v845, %v846
    %v848 = vsel %vm53, %v825, 0.0
    %v849 = vadd.f32 %v847, %v848
    %v850 = vsel %vm53, %v826, 0.0
    %v851 = vadd.f32 %v849, %v850
    %v852 = vsel %vm53, %v827, 0.0
    %v853 = vadd.f32 %v851, %v852
    %v854 = vsel %vm53, %v828, 0.0
    %v855 = vadd.f32 %v853, %v854
    %v856 = vsel %vm53, %v829, 0.0
    %v857 = vadd.f32 %v855, %v856
    %v858 = vsel %vm53, %v830, 0.0
    %v859 = vadd.f32 %v857, %v858
    %v860 = vsel %vm53, %v831, 0.0
    %v861 = vadd.f32 %v859, %v860
    %v862 = vsel %vm53, %v832, 0.0
    %v863 = vadd.f32 %v861, %v862
    %v864 = vrot.slane %v863, 4
    %v865 = vadd.f32 %v863, %v864
    %v866 = vrot.slane %v865, 2
    %v867 = vadd.f32 %v865, %v866
    %v868 = vrot.slane %v867, 1
    %v869 = vadd.f32 %v867, %v868
    %vm870 = vcmask 253952
    %871 = vst.msk [vmem:[%s5] sm:$0x1] %vm870, %v869
    // Predicated region
    $region18: #{quantize_forward.1} parent=1 // pred_check
      _
    $region19: #{quantize_forward.1} parent=1 // pred_check_branch
      %873 = sbr.rel (0) target = $region21
    $region20: #{quantize_forward.1} parent=1 // pred_region
      %s875 = ssub.s32 2048, 2048
      %876 = vsyncadd [#allocation4], %s875
      %s877 = sshll.u32 [#allocation5], 4
      %s878 = int_to_ptr.vmem [resolvable:$true] %s877
      %883 = dma.vmem_to_hbm [thread:$0]  %s878, 2048, %s3, [#allocation4], 128, 128, 8
    $region21: #{quantize_forward.1} parent=1 // pred_fallthru
      _
    // Predicated region
    $region22: #{quantize_forward.1} parent=1 // pred_check
      _
    $region23: #{quantize_forward.1} parent=1 // pred_check_branch
      %885 = sbr.rel (0) target = $region25
    $region24: #{quantize_forward.1} parent=1 // pred_region
      _
    $region25: #{quantize_forward.1} parent=1 // pred_fallthru
      _
    // Predicated region
    $region26: #{quantize_forward.1} parent=1 // pred_check
      _
    $region27: #{quantize_forward.1} parent=1 // pred_check_branch
      %887 = sbr.rel (0) target = $region29
    $region28: #{quantize_forward.1} parent=1 // pred_region
      _
    $region29: #{quantize_forward.1} parent=1 // pred_fallthru
      _
    // Predicated region
    $region30: #{quantize_forward.1} parent=1 // pred_check
      _
    $region31: #{quantize_forward.1} parent=1 // pred_check_branch
      %889 = sbr.rel (0) target = $region33
    $region32: #{quantize_forward.1} parent=1 // pred_region
      %890 = dma.done [#allocation4], 2048
    $region33: #{quantize_forward.1} parent=1 // pred_fallthru
      _
    // Predicated region
    $region34: #{quantize_forward.1} parent=1 // pred_check
      _
    $region35: #{quantize_forward.1} parent=1 // pred_check_branch
      %892 = sbr.rel (0) target = $region37
    $region36: #{quantize_forward.1} parent=1 // pred_region
      _
    $region37: #{quantize_forward.1} parent=1 // pred_fallthru
      _
    // Predicated region
    $region38: #{quantize_forward.1} parent=1 // pred_check
      _
    $region39: #{quantize_forward.1} parent=1 // pred_check_branch
      %894 = sbr.rel (0) target = $region41
    $region40: #{quantize_forward.1} parent=1 // pred_region
      _
    $region41: #{quantize_forward.1} parent=1 // pred_fallthru
      _
    %895 = vsyncpa [#allocation3], 1
    %896 = vsyncpa [#allocation4], 1

</llo_original>
